<compile_context>
chip_gen: v7x
topology: tpu7x:2x2x1
jax: 0.10.0
libtpu: 0.0.40
codegen_flags: <defaults>
</compile_context>

<pallas_src>
import jax
import jax.numpy as jnp
from jax.experimental import pallas as pl
from jax.experimental.pallas import tpu as pltpu

LRELU_SLOPE = 0.2
BN_EPS = 1e-5
_VMEM_LIMIT = 32 * 1024 * 1024   # explicit, safe on v7x (64 MiB physical VMEM)

_SMEM_SPEC = pl.BlockSpec(memory_space=pltpu.MemorySpace.SMEM)


# ----------------------------------------------------------------------------
# small helpers
# ----------------------------------------------------------------------------

def _round_up(x, m):
    return ((x + m - 1) // m) * m


def _full_vmem_spec(shape):
    """BlockSpec covering the whole array (single grid step), resident in VMEM."""
    zeros = (0,) * len(shape)
    return pl.BlockSpec(tuple(shape), lambda i, _z=zeros: _z)


def _flatten_weight(w):
    """PyTorch Conv1d weight (Cout, Cin, K) -> (K*Cin, Cout), tap-major/channel-minor."""
    Cout, Cin, K = w.shape
    return jnp.transpose(w, (2, 1, 0)).reshape(K * Cin, Cout)


def _parity_patches_layer0(x_ncl, K=4, stride=2):
    """Layer-0 im2col (tiny: Kdim = K*Cin), parity-split over output positions.

    Row layout: row = ((b*2 + parity) * T0h + t_half), output position
    t = 2*t_half + parity.  Columns are tap-major / channel-minor (k*C + c),
    matching _flatten_weight.  Returns (rows, K*C) f32, Lout0, T0h.
    """
    B, C, L = x_ncl.shape
    x_cl = jnp.transpose(x_ncl, (0, 2, 1)).astype(jnp.float32)     # (B, L, C)
    Lout0 = (L - K) // stride + 1
    n_even = (Lout0 + 1) // 2
    n_odd = Lout0 // 2
    T0h = _round_up(max(n_even, n_odd), 8)
    step = 2 * stride
    halves = []
    for parity, cnt in ((0, n_even), (1, n_odd)):
        taps = []
        for k in range(K):
            start = stride * parity + k
            taps.append(x_cl[:, start:start + step * (cnt - 1) + 1:step, :])  # (B,cnt,C)
        p = jnp.concatenate(taps, axis=-1)                         # (B, cnt, K*C)
        p = jnp.pad(p, ((0, 0), (0, T0h - cnt), (0, 0)))
        halves.append(p)
    p0 = jnp.stack(halves, axis=1)                                 # (B, 2, T0h, K*C)
    return p0.reshape(B * 2 * T0h, K * C), Lout0, T0h


# ----------------------------------------------------------------------------
# fused scalar-loss kernel: L1(rec) + MSE(codebook) in one call
# ----------------------------------------------------------------------------

def _make_loss_kernel(n_rec, n_cb):
    inv_rec = 1.0 / float(n_rec)
    inv_cb = 1.0 / float(n_cb)

    def kernel(xh_ref, x_ref, zq_ref, ze_ref, out_ref):
        d1 = xh_ref[...] - x_ref[...]
        d2 = zq_ref[...] - ze_ref[...]
        out_ref[0, 0] = jnp.sum(jnp.abs(d1)) * inv_rec
        out_ref[0, 1] = jnp.sum(d2 * d2) * inv_cb

    return kernel


def _flat_pad_rows(a, width=128, row_mult=8):
    """Flatten to a lane-dense (rows, 128) f32 slab (zero pads cancel in a-b)."""
    flat = a.reshape(-1).astype(jnp.float32)
    n = int(flat.shape[0])
    n_pad = _round_up(n, width * row_mult)
    flat = jnp.pad(flat, (0, n_pad - n))
    return flat.reshape(-1, width), n


def fused_rec_and_codebook_losses(x_hat, x, z_q, z_e):
    a1, n1 = _flat_pad_rows(x_hat)
    b1, _ = _flat_pad_rows(x)
    a2, n2 = _flat_pad_rows(z_q)
    b2, _ = _flat_pad_rows(z_e)
    # TODO(synk): for very large inputs, grid over row tiles with (8,128) f32
    # VMEM vector accumulators and per-tile partial sums (v7x "parallel" axis).
    out = pl.pallas_call(
        _make_loss_kernel(n1, n2),
        out_shape=jax.ShapeDtypeStruct((1, 2), jnp.float32),
        grid=(1,),
        in_specs=[_full_vmem_spec(a1.shape), _full_vmem_spec(b1.shape),
                  _full_vmem_spec(a2.shape), _full_vmem_spec(b2.shape)],
        out_specs=_SMEM_SPEC,
        compiler_params=pltpu.CompilerParams(
            dimension_semantics=("arbitrary",),
            vmem_limit_bytes=_VMEM_LIMIT),
    )(a1, b1, a2, b2)
    return out[0, 0], out[0, 1]


# ----------------------------------------------------------------------------
# fused discriminator kernel (all 4 layers + generator-loss mean, 1 pallas_call)
# ----------------------------------------------------------------------------

def _make_disc_kernel(B, K, T0h, Lout1, Lout2, Lout3, alpha, eps):
    m1 = float(B * Lout1)
    m2 = float(B * Lout2)
    inv_out = 1.0 / float(B * Lout3)

    def kernel(p0_ref, w0_ref, b0_ref,
               w1_ref, g1_ref, be1_ref,
               w2_ref, g2_ref, be2_ref,
               w3_ref, b3_ref,
               out_ref, h0_s, h1_s, h2_s):
        # ---- layer 0: Conv1d(Cin -> C0, k=4, s=2, bias) + LeakyReLU.
        # Rows are parity-split (b, parity, t/2); padded rows are never read by
        # layer 1 (its taps stay inside the valid per-parity range).
        y0 = jnp.dot(p0_ref[...], w0_ref[...],
                     preferred_element_type=jnp.float32) + b0_ref[...]
        h0 = jnp.where(y0 >= 0, y0, alpha * y0)
        for g in range(2 * B):
            h0_s[g, :, :] = h0[g * T0h:(g + 1) * T0h, :]

        def conv_bn_lrelu(taps, w_ref, g_ref, be_ref, lout, m, dst_s):
            """Conv (K taps, per-batch) + two-pass BatchNorm + LeakyReLU -> dst_s."""
            ys = []
            ssum = None
            for b in range(B):
                acc = None
                for k in range(K):
                    contrib = jnp.dot(taps(b, k), w_ref[k],
                                      preferred_element_type=jnp.float32)
                    acc = contrib if acc is None else acc + contrib
                ys.append(acc)
                rs = jnp.sum(acc, axis=0, keepdims=True)
                ssum = rs if ssum is None else ssum + rs
            mean = ssum * (1.0 / m)
            vsum = None
            for b in range(B):
                d = ys[b] - mean
                ds = jnp.sum(d * d, axis=0, keepdims=True)
                vsum = ds if vsum is None else vsum + ds
            var = vsum * (1.0 / m)                      # biased var (training BN)
            scale = g_ref[...] * jax.lax.rsqrt(var + eps)
            shift = be_ref[...] - mean * scale
            for b in range(B):
                h = ys[b] * scale + shift
                dst_s[b, 0:lout, :] = jnp.where(h >= 0, h, alpha * h)

        # ---- layer 1: Conv1d(C0 -> C1, k=4, s=2, bias=False) + BN + LeakyReLU.
        # Stride-2 taps become contiguous slices of the parity-split h0 scratch.
        conv_bn_lrelu(
            lambda b, k: h0_s[2 * b + (k % 2), (k // 2):(k // 2) + Lout1, :],
            w1_ref, g1_ref, be1_ref, Lout1, m1, h1_s)

        # ---- layer 2: Conv1d(C1 -> C2, k=4, s=1, bias=False) + BN + LeakyReLU.
        conv_bn_lrelu(
            lambda b, k: h1_s[b, k:k + Lout2, :],
            w2_ref, g2_ref, be2_ref, Lout2, m2, h2_s)

        # ---- out_conv (Cout=1, k=4, s=1, bias) fused with the generator mean:
        # mean_{b,t}(sum_k h2[b, t+k, :] . w3_k) + b3
        acc = None
        for b in range(B):
            for k in range(K):
                part = jnp.sum(h2_s[b, k:k + Lout3, :] * w3_ref[k:k + 1, :])
                acc = part if acc is None else acc + part
        out_ref[0, 0] = acc * inv_out + b3_ref[0]

    return kernel


def discriminator_mean_logit(params, x_ncl):
    """Mean of the discriminator logits over (B, 1, Lout) — the only quantity
    the generator loss needs.  One fused pallas_call for the whole stack."""
    B, C, L = x_ncl.shape
    K = 4
    p0, Lout0, T0h = _parity_patches_layer0(x_ncl, K=K, stride=2)
    Lout1 = (Lout0 - K) // 2 + 1
    Lout2 = Lout1 - K + 1
    Lout3 = Lout2 - K + 1
    assert Lout3 >= 1, "input too short for the 4-layer discriminator"

    C0 = params["w0"].shape[0]
    C1 = params["w1"].shape[0]
    C2 = params["w2"].shape[0]

    w0f = _flatten_weight(params["w0"]).astype(jnp.float32)            # (K*C, C0)
    b0 = params["b0"].reshape(1, C0).astype(jnp.float32)
    w1t = jnp.transpose(params["w1"], (2, 1, 0)).astype(jnp.float32)   # (K, C0, C1)
    g1 = params["g1"].reshape(1, C1).astype(jnp.float32)
    be1 = params["be1"].reshape(1, C1).astype(jnp.float32)
    w2t = jnp.transpose(params["w2"], (2, 1, 0)).astype(jnp.float32)   # (K, C1, C2)
    g2 = params["g2"].reshape(1, C2).astype(jnp.float32)
    be2 = params["be2"].reshape(1, C2).astype(jnp.float32)
    w3t = jnp.transpose(params["w3"][0], (1, 0)).astype(jnp.float32)   # (K, C2)
    b3 = params["b3"].reshape(1).astype(jnp.float32)

    vmem_operands = (p0, w0f, b0, w1t, g1, be1, w2t, g2, be2, w3t)
    in_specs = [_full_vmem_spec(o.shape) for o in vmem_operands] + [_SMEM_SPEC]

    out = pl.pallas_call(
        _make_disc_kernel(B, K, T0h, Lout1, Lout2, Lout3, LRELU_SLOPE, BN_EPS),
        out_shape=jax.ShapeDtypeStruct((1, 1), jnp.float32),
        grid=(1,),
        in_specs=in_specs,
        out_specs=_SMEM_SPEC,
        scratch_shapes=[
            pltpu.VMEM((2 * B, T0h, C0), jnp.float32),                 # h0 (parity-split)
            pltpu.VMEM((B, _round_up(Lout1, 8), C1), jnp.float32),     # h1
            pltpu.VMEM((B, _round_up(Lout2, 8), C2), jnp.float32),     # h2
        ],
        compiler_params=pltpu.CompilerParams(
            dimension_semantics=("arbitrary",),
            vmem_limit_bytes=_VMEM_LIMIT),
    )(*vmem_operands, b3)
    return out[0, 0]


# ----------------------------------------------------------------------------
# Discriminator params (PatchGAN Conv1d stack), n_layers=2, start_channels=64
# ----------------------------------------------------------------------------

def init_discriminator_params(key, in_channels=2, n_layers=2, start_channels=64):
    ks = jax.random.split(key, 8)
    p = {}
    # init_conv: Conv1d(in, 64, k=4, s=2) + LeakyReLU     (weights ~ N(0, 0.02))
    p["w0"] = 0.02 * jax.random.normal(ks[0], (start_channels, in_channels, 4), jnp.float32)
    p["b0"] = jnp.zeros((start_channels,), jnp.float32)
    # block 1: Conv1d(64, 128, k=4, s=2, bias=False) + BN + LeakyReLU
    c1 = start_channels * min(2 ** 1, 4)
    p["w1"] = 0.02 * jax.random.normal(ks[1], (c1, start_channels, 4), jnp.float32)
    p["g1"] = 1.0 + 0.02 * jax.random.normal(ks[2], (c1,), jnp.float32)
    p["be1"] = jnp.zeros((c1,), jnp.float32)
    # block 2: Conv1d(128, 256, k=4, s=1, bias=False) + BN + LeakyReLU
    c2 = start_channels * min(2 ** n_layers, 4)
    p["w2"] = 0.02 * jax.random.normal(ks[3], (c2, c1, 4), jnp.float32)
    p["g2"] = 1.0 + 0.02 * jax.random.normal(ks[4], (c2,), jnp.float32)
    p["be2"] = jnp.zeros((c2,), jnp.float32)
    # out_conv: Conv1d(256, 1, k=4, s=1)
    p["w3"] = 0.02 * jax.random.normal(ks[5], (1, c2, 4), jnp.float32)
    p["b3"] = jnp.zeros((1,), jnp.float32)
    return p


# ----------------------------------------------------------------------------
# VQLossFn.forward
# ----------------------------------------------------------------------------

def vq_loss_forward(disc_params, x_hat, x, z_e, z_q, disc_training=True,
                    codebook_weight=1.0, commitment_weight=0.25, disc_weight=1.0):
    log = {}

    # Reconstruction loss (L1) and codebook MSE in one fused kernel.
    rec_loss, cb_mse = fused_rec_and_codebook_losses(x_hat, x, z_q, z_e)
    loss = rec_loss
    log["rec_loss"] = rec_loss

    # codebook loss: detach() does not change forward values, so
    # embedding_loss == commitment_loss == mean((z_q - z_e)^2).
    codebook_loss = codebook_weight * (1.0 + commitment_weight) * cb_mse
    loss = loss + codebook_loss
    log["codebook_loss"] = codebook_loss

    if disc_weight > 0 and disc_training:
        mean_logit = discriminator_mean_logit(disc_params, x_hat)
        generator_loss = -mean_logit * disc_weight
        loss = loss + generator_loss
        log["generator_loss"] = generator_loss

    log["loss"] = loss
    return jnp.reshape(loss, (1,)), log   # matches torch.tensor([0.0]) shape (1,)


# ----------------------------------------------------------------------------
# main
# ----------------------------------------------------------------------------

if __name__ == "__main__":
    key = jax.random.PRNGKey(0)
    k_param, k_x, k_n, k_ze, k_zq = jax.random.split(key, 5)

    B, C, L = 2, 2, 64          # disc_in_channels = 2
    D, Lz = 8, 16               # latent shapes for z_e / z_q

    x = jax.random.normal(k_x, (B, C, L), jnp.float32)
    x_hat = x + 0.1 * jax.random.normal(k_n, (B, C, L), jnp.float32)
    z_e = jax.random.normal(k_ze, (B, D, Lz), jnp.float32)
    z_q = z_e + 0.05 * jax.random.normal(k_zq, (B, D, Lz), jnp.float32)

    disc_params = init_discriminator_params(k_param, in_channels=C, n_layers=2,
                                            start_channels=64)

    loss, log = vq_loss_forward(disc_params, x_hat, x, z_e, z_q, disc_training=True)
    loss = jax.block_until_ready(loss)
    log = {k: float(jax.block_until_ready(v)) for k, v in log.items()}

    assert loss.shape == (1,) and bool(jnp.isfinite(loss).all())
    print("KERNEL_OK")
</pallas_src>

<mosaic_0001>
module attributes {stable_mosaic.version = 11 : i64} {
  func.func @kernel(%arg0: i32, %arg1: memref<8x128xf32, #tpu.memory_space<vmem>>, %arg2: memref<8x128xf32, #tpu.memory_space<vmem>>, %arg3: memref<8x128xf32, #tpu.memory_space<vmem>>, %arg4: memref<8x128xf32, #tpu.memory_space<vmem>>, %arg5: memref<1x2xf32, #tpu.memory_space<smem>>) attributes {dimension_semantics = [#tpu.dimension_semantics<arbitrary>], iteration_bounds = array<i64: 1>, scalar_prefetch = 0 : i64, scratch_operands = 0 : i64, tpu.core_type = #tpu.core_type<tc>, window_params = [{pipeline_mode = #tpu.pipeline_mode<synchronous>, transform_indices = @transform_0, window_bounds = array<i64: 8, 128>}, {pipeline_mode = #tpu.pipeline_mode<synchronous>, transform_indices = @transform_1, window_bounds = array<i64: 8, 128>}, {pipeline_mode = #tpu.pipeline_mode<synchronous>, transform_indices = @transform_2, window_bounds = array<i64: 8, 128>}, {pipeline_mode = #tpu.pipeline_mode<synchronous>, transform_indices = @transform_3, window_bounds = array<i64: 8, 128>}, {transform_indices = @transform_4, window_bounds = array<i64: 1, 2>}]} {
    %c0 = arith.constant 0 : index
    %c0_0 = arith.constant 0 : index
    %0 = vector.load %arg1[%c0, %c0_0] : memref<8x128xf32, #tpu.memory_space<vmem>>, vector<8x128xf32>
    %c0_1 = arith.constant 0 : index
    %c0_2 = arith.constant 0 : index
    %1 = vector.load %arg2[%c0_1, %c0_2] : memref<8x128xf32, #tpu.memory_space<vmem>>, vector<8x128xf32>
    %2 = arith.subf %0, %1 : vector<8x128xf32>
    %c0_3 = arith.constant 0 : index
    %c0_4 = arith.constant 0 : index
    %3 = vector.load %arg3[%c0_3, %c0_4] : memref<8x128xf32, #tpu.memory_space<vmem>>, vector<8x128xf32>
    %c0_5 = arith.constant 0 : index
    %c0_6 = arith.constant 0 : index
    %4 = vector.load %arg4[%c0_5, %c0_6] : memref<8x128xf32, #tpu.memory_space<vmem>>, vector<8x128xf32>
    %5 = arith.subf %3, %4 : vector<8x128xf32>
    %6 = math.absf %2 : vector<8x128xf32>
    %7 = vector.shape_cast %6 : vector<8x128xf32> to vector<1x8x128xf32>
    %cst = arith.constant dense<0.000000e+00> : vector<1xf32>
    %8 = vector.multi_reduction <add>, %7, %cst [1, 2] : vector<1x8x128xf32> to vector<1xf32>
    %9 = vector.shape_cast %8 : vector<1xf32> to vector<1x1x1xf32>
    %10 = vector.extract %9[0, 0, 0] : f32 from vector<1x1x1xf32>
    %cst_7 = arith.constant 3.906250e-03 : f32
    %11 = arith.mulf %10, %cst_7 : f32
    %c0_8 = arith.constant 0 : index
    %c0_9 = arith.constant 0 : index
    %12 = memref.load %arg5[%c0_8, %c0_9] : memref<1x2xf32, #tpu.memory_space<smem>>
    memref.store %11, %arg5[%c0_8, %c0_9] : memref<1x2xf32, #tpu.memory_space<smem>>
    %13 = arith.mulf %5, %5 : vector<8x128xf32>
    %14 = vector.shape_cast %13 : vector<8x128xf32> to vector<1x8x128xf32>
    %cst_10 = arith.constant dense<0.000000e+00> : vector<1xf32>
    %15 = vector.multi_reduction <add>, %14, %cst_10 [1, 2] : vector<1x8x128xf32> to vector<1xf32>
    %16 = vector.shape_cast %15 : vector<1xf32> to vector<1x1x1xf32>
    %17 = vector.extract %16[0, 0, 0] : f32 from vector<1x1x1xf32>
    %cst_11 = arith.constant 3.906250e-03 : f32
    %18 = arith.mulf %17, %cst_11 : f32
    %c0_12 = arith.constant 0 : index
    %c1 = arith.constant 1 : index
    %19 = memref.load %arg5[%c0_12, %c1] : memref<1x2xf32, #tpu.memory_space<smem>>
    memref.store %18, %arg5[%c0_12, %c1] : memref<1x2xf32, #tpu.memory_space<smem>>
    return
  }
  func.func @transform_0(%arg0: i32) -> (i32, i32) {
    %c0_i32 = arith.constant 0 : i32
    %c0_i32_0 = arith.constant 0 : i32
    %c0_i32_1 = arith.constant 0 : i32
    return %c0_i32, %c0_i32_0 : i32, i32
  }
  func.func @transform_1(%arg0: i32) -> (i32, i32) {
    %c0_i32 = arith.constant 0 : i32
    %c0_i32_0 = arith.constant 0 : i32
    %c0_i32_1 = arith.constant 0 : i32
    return %c0_i32, %c0_i32_0 : i32, i32
  }
  func.func @transform_2(%arg0: i32) -> (i32, i32) {
    %c0_i32 = arith.constant 0 : i32
    %c0_i32_0 = arith.constant 0 : i32
    %c0_i32_1 = arith.constant 0 : i32
    return %c0_i32, %c0_i32_0 : i32, i32
  }
  func.func @transform_3(%arg0: i32) -> (i32, i32) {
    %c0_i32 = arith.constant 0 : i32
    %c0_i32_0 = arith.constant 0 : i32
    %c0_i32_1 = arith.constant 0 : i32
    return %c0_i32, %c0_i32_0 : i32, i32
  }
  func.func @transform_4(%arg0: i32) -> (i32, i32) {
    %c0_i32 = arith.constant 0 : i32
    %c0_i32_0 = arith.constant 0 : i32
    %c0_i32_1 = arith.constant 0 : i32
    return %c0_i32, %c0_i32_0 : i32, i32
  }
}

</mosaic_0001>

<llo_original>
// kernel: tpu_custom_call.1
$region0: #{tpu_custom_call.1}
  #allocation0 [shape = 'u32[]', space=smem, size = 0x4, offset = 0x4, fixed_abs, tag = 'smem constant byte address 0x4 - core index']
  #allocation1 [shape = 'u32[144,128]{1,0:T(1,128)}', space=vmem, size = 0x12000, scoped, tag = 'internal scratch']
  %s0 = inlined_call_operand.hbm [shape: f32[8,128], index: 0, kind: input, shape index: {}]
  %s1 = inlined_call_operand.hbm [shape: f32[8,128], index: 1, kind: input, shape index: {}]
  %s2 = inlined_call_operand.hbm [shape: f32[8,128], index: 2, kind: input, shape index: {}]
  %s3 = inlined_call_operand.vmem [shape: f32[8,128], index: 3, kind: input, shape index: {}]
  %s4 = inlined_call_operand.hbm [shape: f32[1,2], index: 4, kind: output, shape index: {}]
  %s5 = sld [smem:[#allocation0]]
  $region38: #{tpu_custom_call.1} parent=0
    _
  %s7 = ssub.s32 1, %s5
  %s8 = scalar_select 0, %s7, %s5
  $region1: #{tpu_custom_call.1} parent=0
    #allocation2 [shape = 'u8[4096]{0}', space=vmem, size = 0x1000, scoped, tag = 'input window, operand 0, single buffered']
    #allocation3 [shape = 's32[1]{0}', space=sflag, size = 0x4, scoped, tag = 'scoped memory for tpu_custom_call.1']
    #allocation4 [shape = 's32[1]{0}', space=sflag, size = 0x4, scoped, tag = 'scoped memory for tpu_custom_call.1']
    #allocation5 [shape = 'u8[4096]{0}', space=vmem, size = 0x1000, scoped, tag = 'input window, operand 1, single buffered']
    #allocation6 [shape = 's32[1]{0}', space=sflag, size = 0x4, scoped, tag = 'scoped memory for tpu_custom_call.1']
    #allocation7 [shape = 'u8[4096]{0}', space=vmem, size = 0x1000, scoped, tag = 'input window, operand 2, single buffered']
    #allocation8 [shape = 'u8[512]{0}', space=smem, size = 0x200, scoped, tag = 'output window, operand 0, single buffered']
    %9 = vsyncpa [#allocation3], 0
    %10 = vsyncpa [#allocation6], 0
    %11 = vsyncpa [#allocation4], 0
    // Predicated region
    $region2: #{tpu_custom_call.1} parent=1 // pred_check
      _
    $region3: #{tpu_custom_call.1} parent=1 // pred_check_branch
      %13 = sbr.rel (0) target = $region5
    $region4: #{tpu_custom_call.1} parent=1 // pred_region
      %s15 = ssub.s32 128, 128
      %16 = vsyncadd [#allocation3], %s15
      %s18 = sshll.u32 [#allocation2], 4
      %s19 = int_to_ptr.vmem [resolvable:$true] %s18
      %21 = dma.hbm_to_vmem [thread:$0]  %s0, 128, %s19, [#allocation3]
    $region5: #{tpu_custom_call.1} parent=1 // pred_fallthru
      _
    // Predicated region
    $region6: #{tpu_custom_call.1} parent=1 // pred_check
      _
    $region7: #{tpu_custom_call.1} parent=1 // pred_check_branch
      %23 = sbr.rel (0) target = $region9
    $region8: #{tpu_custom_call.1} parent=1 // pred_region
      %s25 = ssub.s32 128, 128
      %26 = vsyncadd [#allocation6], %s25
      %s28 = sshll.u32 [#allocation5], 4
      %s29 = int_to_ptr.vmem [resolvable:$true] %s28
      %31 = dma.hbm_to_vmem [thread:$0]  %s1, 128, %s29, [#allocation6]
    $region9: #{tpu_custom_call.1} parent=1 // pred_fallthru
      _
    // Predicated region
    $region10: #{tpu_custom_call.1} parent=1 // pred_check
      _
    $region11: #{tpu_custom_call.1} parent=1 // pred_check_branch
      %33 = sbr.rel (0) target = $region13
    $region12: #{tpu_custom_call.1} parent=1 // pred_region
      %s35 = ssub.s32 128, 128
      %36 = vsyncadd [#allocation6], %s35
      %s38 = sshll.u32 [#allocation7], 4
      %s39 = int_to_ptr.vmem [resolvable:$true] %s38
      %41 = dma.hbm_to_vmem [thread:$0]  %s2, 128, %s39, [#allocation6]
    $region13: #{tpu_custom_call.1} parent=1 // pred_fallthru
      _
    // Predicated region
    $region14: #{tpu_custom_call.1} parent=1 // pred_check
      _
    $region15: #{tpu_custom_call.1} parent=1 // pred_check_branch
      %43 = sbr.rel (0) target = $region17
    $region16: #{tpu_custom_call.1} parent=1 // pred_region
      _
    $region17: #{tpu_custom_call.1} parent=1 // pred_fallthru
      _
    // Predicated region
    $region18: #{tpu_custom_call.1} parent=1 // pred_check
      _
    $region19: #{tpu_custom_call.1} parent=1 // pred_check_branch
      %45 = sbr.rel (0) target = $region21
    $region20: #{tpu_custom_call.1} parent=1 // pred_region
      %46 = dma.done [#allocation3], 128
    $region21: #{tpu_custom_call.1} parent=1 // pred_fallthru
      _
    // Predicated region
    $region22: #{tpu_custom_call.1} parent=1 // pred_check
      _
    $region23: #{tpu_custom_call.1} parent=1 // pred_check_branch
      %48 = sbr.rel (0) target = $region25
    $region24: #{tpu_custom_call.1} parent=1 // pred_region
      %49 = dma.done [#allocation6], 128
    $region25: #{tpu_custom_call.1} parent=1 // pred_fallthru
      _
    // Predicated region
    $region26: #{tpu_custom_call.1} parent=1 // pred_check
      _
    $region27: #{tpu_custom_call.1} parent=1 // pred_check_branch
      %51 = sbr.rel (0) target = $region29
    $region28: #{tpu_custom_call.1} parent=1 // pred_region
      %52 = dma.done [#allocation6], 128
    $region29: #{tpu_custom_call.1} parent=1 // pred_fallthru
      _
    %v53 = vld [vmem:[#allocation2] sm:$0xff]
    %v54 = vld [vmem:[#allocation5] sm:$0xff]
    %v55 = vsub.f32 %v53, %v54
    %v56 = vld [vmem:[#allocation7] sm:$0xff]
    %v57 = vld [vmem:[%s3] sm:$0xff]
    %v58 = vsub.f32 %v56, %v57
    %v59 = vand.u32 2147483647, %v55
    %60 = vadd.xlane.f32.xlu0 %v59
    %v61 = vpop.xlane.xlu0 %60
    %v62 = vrot.slane %v61, 4
    %v63 = vadd.f32 %v61, %v62
    %v64 = vrot.slane %v63, 2
    %v65 = vadd.f32 %v63, %v64
    %v66 = vrot.slane %v65, 1
    %v67 = vadd.f32 %v65, %v66
    %s68 = vtos %v67
    %s69 = smul.f32 %s68, 0.00390625
    %s70 = scalar_lea.smem [#allocation8], 0
    %71 = sst [smem:[%s70]] %s69
    %v72 = vmul.f32 %v58, %v58
    %73 = vadd.xlane.f32.xlu0 %v72
    %v74 = vpop.xlane.xlu0 %73
    %v75 = vrot.slane %v74, 4
    %v76 = vadd.f32 %v74, %v75
    %v77 = vrot.slane %v76, 2
    %v78 = vadd.f32 %v76, %v77
    %v79 = vrot.slane %v78, 1
    %v80 = vadd.f32 %v78, %v79
    %s81 = vtos %v80
    %s82 = smul.f32 %s81, 0.00390625
    %s83 = scalar_lea.smem [#allocation8], 1
    %84 = sst [smem:[%s83]] %s82
    // Predicated region
    $region30: #{tpu_custom_call.1} parent=1 // pred_check
      _
    $region31: #{tpu_custom_call.1} parent=1 // pred_check_branch
      %86 = sbr.rel (0) target = $region33
    $region32: #{tpu_custom_call.1} parent=1 // pred_region
      %s88 = ssub.s32 16, 16
      %89 = vsyncadd [#allocation4], %s88
      %92 = dma.smem_to_hbm [#allocation8], 16, %s4, [#allocation4]
    $region33: #{tpu_custom_call.1} parent=1 // pred_fallthru
      _
    // Predicated region
    $region34: #{tpu_custom_call.1} parent=1 // pred_check
      _
    $region35: #{tpu_custom_call.1} parent=1 // pred_check_branch
      %94 = sbr.rel (0) target = $region37
    $region36: #{tpu_custom_call.1} parent=1 // pred_region
      %95 = dma.done [#allocation4], 16
    $region37: #{tpu_custom_call.1} parent=1 // pred_fallthru
      _
    %96 = sfence
    %97 = vsyncpa [#allocation3], 1
    %98 = vsyncpa [#allocation6], 1
    %99 = vsyncpa [#allocation4], 1

</llo_original>
